<compile_context>
chip_gen: v5e
topology: v5e:2x2
jax: 0.10.0
libtpu: 0.0.40
codegen_flags: <defaults>
</compile_context>

<pallas_src>
import numpy as np
import jax
import jax.numpy as jnp
from jax.experimental import pallas as pl
from jax.experimental.pallas import tpu as pltpu


# Layer widths of the PyTorch module.
DIMS = [10, 9, 8, 7, 6, 5, 4, 3, 2, 1]
NUM_LAYERS = len(DIMS) - 1          # 9
BIAS_COL = DIMS[0]                  # lane column 10 of each layer tile holds the bias
PARAM_SUBLANES = 16                 # out-dim (<=9) padded to 16 sublanes
PARAM_LANES = 128                   # in-dim + bias (<=11) padded to 128 lanes
DEFAULT_BATCH_BLOCK = 128           # lane-dense batch block for the gridded path


def mlp_kernel(x_ref, params_ref, out_ref):
    """x_ref: [10, Bblk] (features x batch, batch on lanes).
    params_ref: [9, 16, 128] packed slab (W in [:out, :in], bias in col BIAS_COL).
    out_ref: [1, Bblk]."""
    h = x_ref[...]                                       # [10, Bblk], f32
    for layer in range(NUM_LAYERS):
        in_d, out_d = DIMS[layer], DIMS[layer + 1]
        wb = params_ref[layer]                           # [16, 128] aligned tile load
        w = wb[:out_d, :in_d]                            # [out, in]  (PyTorch orientation)
        b = wb[:out_d, BIAS_COL:BIAS_COL + 1]            # [out, 1]   broadcasts over lanes
        z = jnp.dot(w, h, preferred_element_type=jnp.float32) + b   # [out, Bblk]
        h = jnp.tanh(z) if layer == 0 else jax.nn.sigmoid(z)
    out_ref[...] = h                                     # [1, Bblk] lane-dense store


def mlp_forward(x, params, *, batch_block=DEFAULT_BATCH_BLOCK):
    """x: [B, 10] f32 (PyTorch layout). params: [9, 16, 128] packed slab. Returns [B, 1]."""
    batch = x.shape[0]
    x_t = jnp.transpose(x)                               # [10, B] — batch on lanes

    if batch >= 2 * batch_block and batch % batch_block == 0:
        # Parallel batch grid: shards across TCs on v7x, pipelines large batches.
        out_t = pl.pallas_call(
            mlp_kernel,
            out_shape=jax.ShapeDtypeStruct((1, batch), jnp.float32),
            grid=(batch // batch_block,),
            in_specs=[
                pl.BlockSpec((DIMS[0], batch_block), lambda i: (0, i)),
                # Constant index map -> param slab DMA'd once, stays resident.
                pl.BlockSpec((NUM_LAYERS, PARAM_SUBLANES, PARAM_LANES),
                             lambda i: (0, 0, 0)),
            ],
            out_specs=pl.BlockSpec((1, batch_block), lambda i: (0, i)),
            compiler_params=pltpu.CompilerParams(
                dimension_semantics=("parallel",)),
        )(x_t, params)
    else:
        # Grid-less: everything resident in VMEM, exactly 2 input DMAs.
        vmem_spec = pl.BlockSpec(memory_space=pltpu.MemorySpace.VMEM)
        out_t = pl.pallas_call(
            mlp_kernel,
            out_shape=jax.ShapeDtypeStruct((1, batch), jnp.float32),
            in_specs=[vmem_spec, vmem_spec],
            out_specs=vmem_spec,
        )(x_t, params)

    return jnp.transpose(out_t)                          # [B, 1]


def init_params(key):
    """Deterministic PyTorch-style init: U(-1/sqrt(fan_in), 1/sqrt(fan_in)).
    Weights kept in native torch [out, in] orientation."""
    weights, biases = [], []
    for i in range(NUM_LAYERS):
        fan_in, fan_out = DIMS[i], DIMS[i + 1]
        key, kw, kb = jax.random.split(key, 3)
        bound = 1.0 / (fan_in ** 0.5)
        w = jax.random.uniform(kw, (fan_out, fan_in), jnp.float32,
                               minval=-bound, maxval=bound)
        b = jax.random.uniform(kb, (fan_out,), jnp.float32,
                               minval=-bound, maxval=bound)
        weights.append(w)
        biases.append(b)
    return weights, biases


def pack_params(weights, biases):
    """Build the single pre-padded [9, 16, 128] parameter slab on the host."""
    slab = np.zeros((NUM_LAYERS, PARAM_SUBLANES, PARAM_LANES), np.float32)
    for l, (w, b) in enumerate(zip(weights, biases)):
        out_d, in_d = w.shape
        slab[l, :out_d, :in_d] = np.asarray(w)
        slab[l, :out_d, BIAS_COL] = np.asarray(b)
    return jnp.asarray(slab)


def reference_forward(x, weights, biases):
    """Pure-JAX reference with PyTorch semantics: y = x @ W.T + b."""
    h = x
    for i, (w, b) in enumerate(zip(weights, biases)):
        z = h @ w.T + b
        h = jnp.tanh(z) if i == 0 else jax.nn.sigmoid(z)
    return h


if __name__ == "__main__":
    key = jax.random.PRNGKey(0)
    key, kx = jax.random.split(key)

    weights, biases = init_params(key)
    params = pack_params(weights, biases)

    # Grid-less path (single lane-dense batch block).
    batch = 128
    x = jax.random.normal(kx, (batch, DIMS[0]), jnp.float32)
    out = jax.block_until_ready(mlp_forward(x, params))
    ref = reference_forward(x, weights, biases)
    assert out.shape == (batch, 1)
    assert jnp.allclose(out, ref, atol=1e-5, rtol=1e-5)

    # Gridded (parallel-batch) path.
    key, kx2 = jax.random.split(key)
    batch2 = 256
    x2 = jax.random.normal(kx2, (batch2, DIMS[0]), jnp.float32)
    out2 = jax.block_until_ready(mlp_forward(x2, params))
    ref2 = reference_forward(x2, weights, biases)
    assert out2.shape == (batch2, 1)
    assert jnp.allclose(out2, ref2, atol=1e-5, rtol=1e-5)

    print("KERNEL_OK")
</pallas_src>

<mosaic_0001>
module attributes {stable_mosaic.version = 11 : i64} {
  func.func @mlp_kernel(%arg0: memref<10x128xf32, #tpu.memory_space<vmem>>, %arg1: memref<9x16x128xf32, #tpu.memory_space<vmem>>, %arg2: memref<1x128xf32, #tpu.memory_space<vmem>>) attributes {dimension_semantics = [], scalar_prefetch = 0 : i64, scratch_operands = 0 : i64, tpu.core_type = #tpu.core_type<tc>} {
    %c0 = arith.constant 0 : index
    %c0_0 = arith.constant 0 : index
    %0 = vector.load %arg0[%c0, %c0_0] : memref<10x128xf32, #tpu.memory_space<vmem>>, vector<10x128xf32>
    %c0_1 = arith.constant 0 : index
    %c0_2 = arith.constant 0 : index
    %c0_3 = arith.constant 0 : index
    %1 = vector.load %arg1[%c0_1, %c0_2, %c0_3] : memref<9x16x128xf32, #tpu.memory_space<vmem>>, vector<1x16x128xf32>
    %2 = vector.shape_cast %1 : vector<1x16x128xf32> to vector<16x128xf32>
    %3 = vector.extract_strided_slice %2 {offsets = [0, 0], sizes = [9, 10], strides = [1, 1]} : vector<16x128xf32> to vector<9x10xf32>
    %4 = vector.extract_strided_slice %2 {offsets = [0, 10], sizes = [9, 1], strides = [1, 1]} : vector<16x128xf32> to vector<9x1xf32>
    %cst = arith.constant dense<0.000000e+00> : vector<9x128xf32>
    %5 = tpu.matmul %3, %0, %cst {dimension_numbers = #tpu.dot_dimension_numbers<[1], [0], [0], [1], [0, 0, 1, 1], [], []>} : vector<9x10xf32>, vector<10x128xf32>, vector<9x128xf32> -> vector<9x128xf32>
    %6 = vector.broadcast %4 : vector<9x1xf32> to vector<9x128xf32>
    %7 = arith.addf %5, %6 : vector<9x128xf32>
    %8 = math.tanh %7 : vector<9x128xf32>
    %c1 = arith.constant 1 : index
    %c0_4 = arith.constant 0 : index
    %c0_5 = arith.constant 0 : index
    %9 = vector.load %arg1[%c1, %c0_4, %c0_5] : memref<9x16x128xf32, #tpu.memory_space<vmem>>, vector<1x16x128xf32>
    %10 = vector.shape_cast %9 : vector<1x16x128xf32> to vector<16x128xf32>
    %11 = vector.extract_strided_slice %10 {offsets = [0, 0], sizes = [8, 9], strides = [1, 1]} : vector<16x128xf32> to vector<8x9xf32>
    %12 = vector.extract_strided_slice %10 {offsets = [0, 10], sizes = [8, 1], strides = [1, 1]} : vector<16x128xf32> to vector<8x1xf32>
    %cst_6 = arith.constant dense<0.000000e+00> : vector<8x128xf32>
    %13 = tpu.matmul %11, %8, %cst_6 {dimension_numbers = #tpu.dot_dimension_numbers<[1], [0], [0], [1], [0, 0, 1, 1], [], []>} : vector<8x9xf32>, vector<9x128xf32>, vector<8x128xf32> -> vector<8x128xf32>
    %14 = vector.broadcast %12 : vector<8x1xf32> to vector<8x128xf32>
    %15 = arith.addf %13, %14 : vector<8x128xf32>
    %16 = arith.negf %15 : vector<8x128xf32>
    %17 = math.exp %16 : vector<8x128xf32>
    %cst_7 = arith.constant 1.000000e+00 : f32
    %18 = vector.broadcast %cst_7 : f32 to vector<8x128xf32>
    %19 = arith.addf %18, %17 : vector<8x128xf32>
    %20 = arith.divf %18, %19 : vector<8x128xf32>
    %c2 = arith.constant 2 : index
    %c0_8 = arith.constant 0 : index
    %c0_9 = arith.constant 0 : index
    %21 = vector.load %arg1[%c2, %c0_8, %c0_9] : memref<9x16x128xf32, #tpu.memory_space<vmem>>, vector<1x16x128xf32>
    %22 = vector.shape_cast %21 : vector<1x16x128xf32> to vector<16x128xf32>
    %23 = vector.extract_strided_slice %22 {offsets = [0, 0], sizes = [7, 8], strides = [1, 1]} : vector<16x128xf32> to vector<7x8xf32>
    %24 = vector.extract_strided_slice %22 {offsets = [0, 10], sizes = [7, 1], strides = [1, 1]} : vector<16x128xf32> to vector<7x1xf32>
    %cst_10 = arith.constant dense<0.000000e+00> : vector<7x128xf32>
    %25 = tpu.matmul %23, %20, %cst_10 {dimension_numbers = #tpu.dot_dimension_numbers<[1], [0], [0], [1], [0, 0, 1, 1], [], []>} : vector<7x8xf32>, vector<8x128xf32>, vector<7x128xf32> -> vector<7x128xf32>
    %26 = vector.broadcast %24 : vector<7x1xf32> to vector<7x128xf32>
    %27 = arith.addf %25, %26 : vector<7x128xf32>
    %28 = arith.negf %27 : vector<7x128xf32>
    %29 = math.exp %28 : vector<7x128xf32>
    %cst_11 = arith.constant 1.000000e+00 : f32
    %30 = vector.broadcast %cst_11 : f32 to vector<7x128xf32>
    %31 = arith.addf %30, %29 : vector<7x128xf32>
    %32 = arith.divf %30, %31 : vector<7x128xf32>
    %c3 = arith.constant 3 : index
    %c0_12 = arith.constant 0 : index
    %c0_13 = arith.constant 0 : index
    %33 = vector.load %arg1[%c3, %c0_12, %c0_13] : memref<9x16x128xf32, #tpu.memory_space<vmem>>, vector<1x16x128xf32>
    %34 = vector.shape_cast %33 : vector<1x16x128xf32> to vector<16x128xf32>
    %35 = vector.extract_strided_slice %34 {offsets = [0, 0], sizes = [6, 7], strides = [1, 1]} : vector<16x128xf32> to vector<6x7xf32>
    %36 = vector.extract_strided_slice %34 {offsets = [0, 10], sizes = [6, 1], strides = [1, 1]} : vector<16x128xf32> to vector<6x1xf32>
    %cst_14 = arith.constant dense<0.000000e+00> : vector<6x128xf32>
    %37 = tpu.matmul %35, %32, %cst_14 {dimension_numbers = #tpu.dot_dimension_numbers<[1], [0], [0], [1], [0, 0, 1, 1], [], []>} : vector<6x7xf32>, vector<7x128xf32>, vector<6x128xf32> -> vector<6x128xf32>
    %38 = vector.broadcast %36 : vector<6x1xf32> to vector<6x128xf32>
    %39 = arith.addf %37, %38 : vector<6x128xf32>
    %40 = arith.negf %39 : vector<6x128xf32>
    %41 = math.exp %40 : vector<6x128xf32>
    %cst_15 = arith.constant 1.000000e+00 : f32
    %42 = vector.broadcast %cst_15 : f32 to vector<6x128xf32>
    %43 = arith.addf %42, %41 : vector<6x128xf32>
    %44 = arith.divf %42, %43 : vector<6x128xf32>
    %c4 = arith.constant 4 : index
    %c0_16 = arith.constant 0 : index
    %c0_17 = arith.constant 0 : index
    %45 = vector.load %arg1[%c4, %c0_16, %c0_17] : memref<9x16x128xf32, #tpu.memory_space<vmem>>, vector<1x16x128xf32>
    %46 = vector.shape_cast %45 : vector<1x16x128xf32> to vector<16x128xf32>
    %47 = vector.extract_strided_slice %46 {offsets = [0, 0], sizes = [5, 6], strides = [1, 1]} : vector<16x128xf32> to vector<5x6xf32>
    %48 = vector.extract_strided_slice %46 {offsets = [0, 10], sizes = [5, 1], strides = [1, 1]} : vector<16x128xf32> to vector<5x1xf32>
    %cst_18 = arith.constant dense<0.000000e+00> : vector<5x128xf32>
    %49 = tpu.matmul %47, %44, %cst_18 {dimension_numbers = #tpu.dot_dimension_numbers<[1], [0], [0], [1], [0, 0, 1, 1], [], []>} : vector<5x6xf32>, vector<6x128xf32>, vector<5x128xf32> -> vector<5x128xf32>
    %50 = vector.broadcast %48 : vector<5x1xf32> to vector<5x128xf32>
    %51 = arith.addf %49, %50 : vector<5x128xf32>
    %52 = arith.negf %51 : vector<5x128xf32>
    %53 = math.exp %52 : vector<5x128xf32>
    %cst_19 = arith.constant 1.000000e+00 : f32
    %54 = vector.broadcast %cst_19 : f32 to vector<5x128xf32>
    %55 = arith.addf %54, %53 : vector<5x128xf32>
    %56 = arith.divf %54, %55 : vector<5x128xf32>
    %c5 = arith.constant 5 : index
    %c0_20 = arith.constant 0 : index
    %c0_21 = arith.constant 0 : index
    %57 = vector.load %arg1[%c5, %c0_20, %c0_21] : memref<9x16x128xf32, #tpu.memory_space<vmem>>, vector<1x16x128xf32>
    %58 = vector.shape_cast %57 : vector<1x16x128xf32> to vector<16x128xf32>
    %59 = vector.extract_strided_slice %58 {offsets = [0, 0], sizes = [4, 5], strides = [1, 1]} : vector<16x128xf32> to vector<4x5xf32>
    %60 = vector.extract_strided_slice %58 {offsets = [0, 10], sizes = [4, 1], strides = [1, 1]} : vector<16x128xf32> to vector<4x1xf32>
    %cst_22 = arith.constant dense<0.000000e+00> : vector<4x128xf32>
    %61 = tpu.matmul %59, %56, %cst_22 {dimension_numbers = #tpu.dot_dimension_numbers<[1], [0], [0], [1], [0, 0, 1, 1], [], []>} : vector<4x5xf32>, vector<5x128xf32>, vector<4x128xf32> -> vector<4x128xf32>
    %62 = vector.broadcast %60 : vector<4x1xf32> to vector<4x128xf32>
    %63 = arith.addf %61, %62 : vector<4x128xf32>
    %64 = arith.negf %63 : vector<4x128xf32>
    %65 = math.exp %64 : vector<4x128xf32>
    %cst_23 = arith.constant 1.000000e+00 : f32
    %66 = vector.broadcast %cst_23 : f32 to vector<4x128xf32>
    %67 = arith.addf %66, %65 : vector<4x128xf32>
    %68 = arith.divf %66, %67 : vector<4x128xf32>
    %c6 = arith.constant 6 : index
    %c0_24 = arith.constant 0 : index
    %c0_25 = arith.constant 0 : index
    %69 = vector.load %arg1[%c6, %c0_24, %c0_25] : memref<9x16x128xf32, #tpu.memory_space<vmem>>, vector<1x16x128xf32>
    %70 = vector.shape_cast %69 : vector<1x16x128xf32> to vector<16x128xf32>
    %71 = vector.extract_strided_slice %70 {offsets = [0, 0], sizes = [3, 4], strides = [1, 1]} : vector<16x128xf32> to vector<3x4xf32>
    %72 = vector.extract_strided_slice %70 {offsets = [0, 10], sizes = [3, 1], strides = [1, 1]} : vector<16x128xf32> to vector<3x1xf32>
    %cst_26 = arith.constant dense<0.000000e+00> : vector<3x128xf32>
    %73 = tpu.matmul %71, %68, %cst_26 {dimension_numbers = #tpu.dot_dimension_numbers<[1], [0], [0], [1], [0, 0, 1, 1], [], []>} : vector<3x4xf32>, vector<4x128xf32>, vector<3x128xf32> -> vector<3x128xf32>
    %74 = vector.broadcast %72 : vector<3x1xf32> to vector<3x128xf32>
    %75 = arith.addf %73, %74 : vector<3x128xf32>
    %76 = arith.negf %75 : vector<3x128xf32>
    %77 = math.exp %76 : vector<3x128xf32>
    %cst_27 = arith.constant 1.000000e+00 : f32
    %78 = vector.broadcast %cst_27 : f32 to vector<3x128xf32>
    %79 = arith.addf %78, %77 : vector<3x128xf32>
    %80 = arith.divf %78, %79 : vector<3x128xf32>
    %c7 = arith.constant 7 : index
    %c0_28 = arith.constant 0 : index
    %c0_29 = arith.constant 0 : index
    %81 = vector.load %arg1[%c7, %c0_28, %c0_29] : memref<9x16x128xf32, #tpu.memory_space<vmem>>, vector<1x16x128xf32>
    %82 = vector.shape_cast %81 : vector<1x16x128xf32> to vector<16x128xf32>
    %83 = vector.extract_strided_slice %82 {offsets = [0, 0], sizes = [2, 3], strides = [1, 1]} : vector<16x128xf32> to vector<2x3xf32>
    %84 = vector.extract_strided_slice %82 {offsets = [0, 10], sizes = [2, 1], strides = [1, 1]} : vector<16x128xf32> to vector<2x1xf32>
    %cst_30 = arith.constant dense<0.000000e+00> : vector<2x128xf32>
    %85 = tpu.matmul %83, %80, %cst_30 {dimension_numbers = #tpu.dot_dimension_numbers<[1], [0], [0], [1], [0, 0, 1, 1], [], []>} : vector<2x3xf32>, vector<3x128xf32>, vector<2x128xf32> -> vector<2x128xf32>
    %86 = vector.broadcast %84 : vector<2x1xf32> to vector<2x128xf32>
    %87 = arith.addf %85, %86 : vector<2x128xf32>
    %88 = arith.negf %87 : vector<2x128xf32>
    %89 = math.exp %88 : vector<2x128xf32>
    %cst_31 = arith.constant 1.000000e+00 : f32
    %90 = vector.broadcast %cst_31 : f32 to vector<2x128xf32>
    %91 = arith.addf %90, %89 : vector<2x128xf32>
    %92 = arith.divf %90, %91 : vector<2x128xf32>
    %c8 = arith.constant 8 : index
    %c0_32 = arith.constant 0 : index
    %c0_33 = arith.constant 0 : index
    %93 = vector.load %arg1[%c8, %c0_32, %c0_33] : memref<9x16x128xf32, #tpu.memory_space<vmem>>, vector<1x16x128xf32>
    %94 = vector.shape_cast %93 : vector<1x16x128xf32> to vector<16x128xf32>
    %95 = vector.extract_strided_slice %94 {offsets = [0, 0], sizes = [1, 2], strides = [1, 1]} : vector<16x128xf32> to vector<1x2xf32>
    %96 = vector.extract_strided_slice %94 {offsets = [0, 10], sizes = [1, 1], strides = [1, 1]} : vector<16x128xf32> to vector<1x1xf32>
    %cst_34 = arith.constant dense<0.000000e+00> : vector<1x128xf32>
    %97 = tpu.matmul %95, %92, %cst_34 {dimension_numbers = #tpu.dot_dimension_numbers<[1], [0], [0], [1], [0, 0, 1, 1], [], []>} : vector<1x2xf32>, vector<2x128xf32>, vector<1x128xf32> -> vector<1x128xf32>
    %98 = vector.broadcast %96 : vector<1x1xf32> to vector<1x128xf32>
    %99 = arith.addf %97, %98 : vector<1x128xf32>
    %100 = arith.negf %99 : vector<1x128xf32>
    %101 = math.exp %100 : vector<1x128xf32>
    %cst_35 = arith.constant 1.000000e+00 : f32
    %102 = vector.broadcast %cst_35 : f32 to vector<1x128xf32>
    %103 = arith.addf %102, %101 : vector<1x128xf32>
    %104 = arith.divf %102, %103 : vector<1x128xf32>
    %c0_36 = arith.constant 0 : index
    %c0_37 = arith.constant 0 : index
    %105 = vector.load %arg2[%c0_36, %c0_37] : memref<1x128xf32, #tpu.memory_space<vmem>>, vector<1x128xf32>
    tpu.vector_store %arg2[%c0_36, %c0_37], %104 {strides = array<i32>} : memref<1x128xf32, #tpu.memory_space<vmem>>, vector<1x128xf32>,
    return
  }
}

</mosaic_0001>

<llo_original>
// kernel: tpu_custom_call.1
$region0: #{tpu_custom_call.1}
  #allocation0 [shape = 'u32[]', space=smem, size = 0x4, offset = 0x4, fixed_abs, tag = 'smem constant byte address 0x4 - core index']
  #allocation1 [shape = 'u32[72,128]{1,0:T(1,128)}', space=vmem, size = 0x9000, scoped, tag = 'internal scratch']
  %s0 = inlined_call_operand.hbm [shape: f32[10,128], index: 0, kind: input, shape index: {}]
  %s1 = inlined_call_operand.hbm [shape: f32[9,16,128], index: 1, kind: input, shape index: {}]
  %s2 = inlined_call_operand.hbm [shape: f32[1,128], index: 2, kind: output, shape index: {}]
  %s3 = sld [smem:[#allocation0]]
  $region26: #{tpu_custom_call.1} parent=0
    _
  %s5 = ssub.s32 1, %s3
  %s6 = scalar_select 0, %s5, %s3
  $region1: #{tpu_custom_call.1} parent=0
    #allocation2 [shape = 'u8[8192]{0}', space=vmem, size = 0x2000, scoped, tag = 'input window, operand 0, single buffered']
    #allocation3 [shape = 's32[1]{0}', space=sflag, size = 0x4, scoped, tag = 'scoped memory for tpu_custom_call.1']
    #allocation4 [shape = 's32[1]{0}', space=sflag, size = 0x4, scoped, tag = 'scoped memory for tpu_custom_call.1']
    #allocation5 [shape = 'u8[73728]{0}', space=vmem, size = 0x12000, scoped, tag = 'input window, operand 1, single buffered']
    #allocation6 [shape = 's32[1]{0}', space=sflag, size = 0x4, scoped, tag = 'scoped memory for tpu_custom_call.1']
    #allocation7 [shape = 'u8[512]{0}', space=vmem, size = 0x400, scoped, tag = 'output window, operand 0, single buffered']
    %7 = vsyncpa [#allocation3], 0
    %8 = vsyncpa [#allocation6], 0
    %9 = vsyncpa [#allocation4], 0
    // Predicated region
    $region2: #{tpu_custom_call.1} parent=1 // pred_check
      _
    $region3: #{tpu_custom_call.1} parent=1 // pred_check_branch
      %11 = sbr.rel (0) target = $region5
    $region4: #{tpu_custom_call.1} parent=1 // pred_region
      %13 = vsyncadd [#allocation3], 0
      %s14 = sshll.u32 %s0, 4
      %s15 = int_to_ptr.hbm [resolvable:$true] %s14
      %s16 = sshll.u32 [#allocation2], 4
      %s17 = int_to_ptr.vmem [resolvable:$true] %s16
      %22 = dma.hbm_to_vmem [thread:$0]  %s15, 256, %s17, [#allocation3], 128, 128, 8
    $region5: #{tpu_custom_call.1} parent=1 // pred_fallthru
      _
    // Predicated region
    $region6: #{tpu_custom_call.1} parent=1 // pred_check
      _
    $region7: #{tpu_custom_call.1} parent=1 // pred_check_branch
      %24 = sbr.rel (0) target = $region9
    $region8: #{tpu_custom_call.1} parent=1 // pred_region
      %26 = vsyncadd [#allocation6], 0
      %s27 = sshll.u32 %s1, 4
      %s28 = int_to_ptr.hbm [resolvable:$true] %s27
      %s29 = sshll.u32 [#allocation5], 4
      %s30 = int_to_ptr.vmem [resolvable:$true] %s29
      %35 = dma.hbm_to_vmem [thread:$0]  %s28, 2304, %s30, [#allocation6], 128, 128, 8
    $region9: #{tpu_custom_call.1} parent=1 // pred_fallthru
      _
    // Predicated region
    $region10: #{tpu_custom_call.1} parent=1 // pred_check
      _
    $region11: #{tpu_custom_call.1} parent=1 // pred_check_branch
      %37 = sbr.rel (0) target = $region13
    $region12: #{tpu_custom_call.1} parent=1 // pred_region
      %39 = dma.done [#allocation3], 256
    $region13: #{tpu_custom_call.1} parent=1 // pred_fallthru
      _
    // Predicated region
    $region14: #{tpu_custom_call.1} parent=1 // pred_check
      _
    $region15: #{tpu_custom_call.1} parent=1 // pred_check_branch
      %41 = sbr.rel (0) target = $region17
    $region16: #{tpu_custom_call.1} parent=1 // pred_region
      %43 = dma.done [#allocation6], 2304
    $region17: #{tpu_custom_call.1} parent=1 // pred_fallthru
      _
    %v44 = vld [vmem:[#allocation2] sm:$0xff]
    %v45 = vld [vmem:[#allocation2 + $0x8] sm:$0x3]
    %v46 = vld [vmem:[#allocation5] sm:$0xff]
    %v47 = vld [vmem:[#allocation5 + $0x8] sm:$0xff]
    %49 = vset.pattern.permute.xlu0 10
    %50 = vperm.xlu0 %49, %v46
    %v51 = vpop.permute.xlu0 %50
    %54 = vset.pattern.permute.xlu0 10
    %55 = vperm.xlu0 %54, %v47
    %v56 = vpop.permute.xlu0 %55
    %vm58 = vcmask 80896
    %v59 = vsel %vm58, %v46, 0
    %v61 = vsel %vm58, %v47, 0
    %vm63 = vcmask 1041408
    %v65 = vsel %vm63, %v45, 0
    %67 = vmatpush.msra.mxu0 0.0
    %68 = vmatpush.msra.mxu0 0.0
    %69 = vmatpush.msra.mxu0 0.0
    %70 = vmatpush.msra.mxu0 0.0
    %71 = vmatpush.msra.mxu0 0.0
    %72 = vmatpush.msra.mxu0 0.0
    %73 = vmatpush.msra.mxu0 0.0
    %74 = vmatpush.msra.mxu0 0.0
    %75 = vmatpush.msra.mxu0 0.0
    %76 = vmatpush.msra.mxu0 0.0
    %77 = vmatpush.msra.mxu0 0.0
    %78 = vmatpush.msra.mxu0 0.0
    %79 = vmatpush.msra.mxu0 0.0
    %80 = vmatpush.msra.mxu0 0.0
    %81 = vmatpush.msra.mxu0 %v65
    %82 = vmatpush.msra.mxu0 %v44
    %83 = vmatmul.f32.gmra.mxu0 %v59
    %v84 = vpop.f32.mrf.mxu0
    %v85 = vadd.f32 %v51, %v84
    %86 = vmatmul.f32.gmra.mxu0 %v61
    %v87 = vpop.f32.mrf.mxu0
    %v88 = vadd.f32 %v56, %v87
    %89 = vdwg.mxu0
    %v90 = vtanh.pop %v85
    %v91 = vtanh.pop %v88
    %s92 = scalar_lea.vmem [#allocation5], 16
    %v93 = vld [vmem:[%s92] sm:$0xff]
    %95 = vset.pattern.permute.xlu0 10
    %96 = vperm.xlu0 %95, %v93
    %v97 = vpop.permute.xlu0 %96
    %vm99 = vcmask 72704
    %v100 = vsel %vm99, %v93, 0
    %vm102 = vcmask 1040384
    %v104 = vsel %vm102, %v91, 0
    %106 = vmatpush.msra.mxu0 0.0
    %107 = vmatpush.msra.mxu0 0.0
    %108 = vmatpush.msra.mxu0 0.0
    %109 = vmatpush.msra.mxu0 0.0
    %110 = vmatpush.msra.mxu0 0.0
    %111 = vmatpush.msra.mxu0 0.0
    %112 = vmatpush.msra.mxu0 0.0
    %113 = vmatpush.msra.mxu0 0.0
    %114 = vmatpush.msra.mxu0 0.0
    %115 = vmatpush.msra.mxu0 0.0
    %116 = vmatpush.msra.mxu0 0.0
    %117 = vmatpush.msra.mxu0 0.0
    %118 = vmatpush.msra.mxu0 0.0
    %119 = vmatpush.msra.mxu0 0.0
    %120 = vmatpush.msra.mxu0 %v104
    %121 = vmatpush.msra.mxu0 %v90
    %122 = vmatmul.f32.gmra.mxu0 %v100
    %v123 = vpop.f32.mrf.mxu0
    %v124 = vadd.f32 %v97, %v123
    %125 = vdwg.mxu0
    %v126 = vxor.u32 %v124, 2147483648
    %v127 = vmul.f32 %v126, 1.442695
    %v128 = vpow.pop %v127
    %v129 = vadd.f32 %v128, 1.0
    %v130 = vrcp.pop %v129
    %v131 = vmul.f32 %v129, %v130
    %v132 = vsub.f32 1.0, %v131
    %v133 = vmul.f32 %v130, %v132
    %v134 = vadd.f32 %v130, %v133
    %vm135 = vweird.f32 %v129
    %vm136 = vweird.f32 %v130
    %vm137 = vmor %vm135, %vm136
    %v138 = vsel %vm137, %v130, %v134
    %v139 = vand.u32 2147483647, %v129
    %vm140 = vcmp.eq.f32.partialorder %v139, 8.507059e+37
    %v141 = vand.u32 %v129, 2147483648
    %v142 = vor.u32 1.1754944e-38, %v141
    %v143 = vsel %vm140, %v142, %v138
    %v144 = vmul.f32 1.0, %v143
    %s145 = scalar_lea.vmem [#allocation5], 32
    %v146 = vld [vmem:[%s145] sm:$0xff]
    %148 = vset.pattern.permute.xlu0 10
    %149 = vperm.xlu0 %148, %v146
    %v150 = vpop.permute.xlu0 %149
    %vm152 = vcmask 64512
    %v153 = vsel %vm152, %v146, 0
    %155 = vmatpush.msra.mxu0 0.0
    %156 = vmatpush.msra.mxu0 0.0
    %157 = vmatpush.msra.mxu0 0.0
    %158 = vmatpush.msra.mxu0 0.0
    %159 = vmatpush.msra.mxu0 0.0
    %160 = vmatpush.msra.mxu0 0.0
    %161 = vmatpush.msra.mxu0 0.0
    %162 = vmatpush.msra.mxu0 0.0
    %163 = vmatpush.msra.mxu0 0.0
    %164 = vmatpush.msra.mxu0 0.0
    %165 = vmatpush.msra.mxu0 0.0
    %166 = vmatpush.msra.mxu0 0.0
    %167 = vmatpush.msra.mxu0 0.0
    %168 = vmatpush.msra.mxu0 0.0
    %169 = vmatpush.msra.mxu0 0.0
    %170 = vmatpush.msra.mxu0 %v144
    %171 = vmatmul.f32.gmra.mxu0 %v153
    %v172 = vpop.f32.mrf.mxu0
    %v173 = vadd.f32 %v150, %v172
    %174 = vdwg.mxu0
    %v175 = vxor.u32 %v173, 2147483648
    %v176 = vmul.f32 %v175, 1.442695
    %v177 = vpow.pop %v176
    %v178 = vadd.f32 %v177, 1.0
    %v179 = vrcp.pop %v178
    %v180 = vmul.f32 %v178, %v179
    %v181 = vsub.f32 1.0, %v180
    %v182 = vmul.f32 %v179, %v181
    %v183 = vadd.f32 %v179, %v182
    %vm184 = vweird.f32 %v178
    %vm185 = vweird.f32 %v179
    %vm186 = vmor %vm184, %vm185
    %v187 = vsel %vm186, %v179, %v183
    %v188 = vand.u32 2147483647, %v178
    %vm189 = vcmp.eq.f32.partialorder %v188, 8.507059e+37
    %v190 = vand.u32 %v178, 2147483648
    %v191 = vor.u32 1.1754944e-38, %v190
    %v192 = vsel %vm189, %v191, %v187
    %v193 = vmul.f32 1.0, %v192
    %s194 = scalar_lea.vmem [#allocation5], 48
    %v195 = vld [vmem:[%s194] sm:$0xff]
    %197 = vset.pattern.permute.xlu0 10
    %198 = vperm.xlu0 %197, %v195
    %v199 = vpop.permute.xlu0 %198
    %vm201 = vcmask 56320
    %v202 = vsel %vm201, %v195, 0
    %vm204 = vcmask 1046528
    %v206 = vsel %vm204, %v193, 0
    %208 = vmatpush.msra.mxu0 0.0
    %209 = vmatpush.msra.mxu0 0.0
    %210 = vmatpush.msra.mxu0 0.0
    %211 = vmatpush.msra.mxu0 0.0
    %212 = vmatpush.msra.mxu0 0.0
    %213 = vmatpush.msra.mxu0 0.0
    %214 = vmatpush.msra.mxu0 0.0
    %215 = vmatpush.msra.mxu0 0.0
    %216 = vmatpush.msra.mxu0 0.0
    %217 = vmatpush.msra.mxu0 0.0
    %218 = vmatpush.msra.mxu0 0.0
    %219 = vmatpush.msra.mxu0 0.0
    %220 = vmatpush.msra.mxu0 0.0
    %221 = vmatpush.msra.mxu0 0.0
    %222 = vmatpush.msra.mxu0 0.0
    %223 = vmatpush.msra.mxu0 %v206
    %224 = vmatmul.f32.gmra.mxu0 %v202
    %v225 = vpop.f32.mrf.mxu0
    %v226 = vadd.f32 %v199, %v225
    %227 = vdwg.mxu0
    %v228 = vxor.u32 %v226, 2147483648
    %v229 = vmul.f32 %v228, 1.442695
    %v230 = vpow.pop %v229
    %v231 = vadd.f32 %v230, 1.0
    %v232 = vrcp.pop %v231
    %v233 = vmul.f32 %v231, %v232
    %v234 = vsub.f32 1.0, %v233
    %v235 = vmul.f32 %v232, %v234
    %v236 = vadd.f32 %v232, %v235
    %vm237 = vweird.f32 %v231
    %vm238 = vweird.f32 %v232
    %vm239 = vmor %vm237, %vm238
    %v240 = vsel %vm239, %v232, %v236
    %v241 = vand.u32 2147483647, %v231
    %vm242 = vcmp.eq.f32.partialorder %v241, 8.507059e+37
    %v243 = vand.u32 %v231, 2147483648
    %v244 = vor.u32 1.1754944e-38, %v243
    %v245 = vsel %vm242, %v244, %v240
    %v246 = vmul.f32 1.0, %v245
    %s247 = scalar_lea.vmem [#allocation5], 64
    %v248 = vld [vmem:[%s247] sm:$0xff]
    %250 = vset.pattern.permute.xlu0 10
    %251 = vperm.xlu0 %250, %v248
    %v252 = vpop.permute.xlu0 %251
    %vm254 = vcmask 48128
    %v255 = vsel %vm254, %v248, 0
    %vm257 = vcmask 1045504
    %v259 = vsel %vm257, %v246, 0
    %261 = vmatpush.msra.mxu0 0.0
    %262 = vmatpush.msra.mxu0 0.0
    %263 = vmatpush.msra.mxu0 0.0
    %264 = vmatpush.msra.mxu0 0.0
    %265 = vmatpush.msra.mxu0 0.0
    %266 = vmatpush.msra.mxu0 0.0
    %267 = vmatpush.msra.mxu0 0.0
    %268 = vmatpush.msra.mxu0 0.0
    %269 = vmatpush.msra.mxu0 0.0
    %270 = vmatpush.msra.mxu0 0.0
    %271 = vmatpush.msra.mxu0 0.0
    %272 = vmatpush.msra.mxu0 0.0
    %273 = vmatpush.msra.mxu0 0.0
    %274 = vmatpush.msra.mxu0 0.0
    %275 = vmatpush.msra.mxu0 0.0
    %276 = vmatpush.msra.mxu0 %v259
    %277 = vmatmul.f32.gmra.mxu0 %v255
    %v278 = vpop.f32.mrf.mxu0
    %v279 = vadd.f32 %v252, %v278
    %280 = vdwg.mxu0
    %v281 = vxor.u32 %v279, 2147483648
    %v282 = vmul.f32 %v281, 1.442695
    %v283 = vpow.pop %v282
    %v284 = vadd.f32 %v283, 1.0
    %v285 = vrcp.pop %v284
    %v286 = vmul.f32 %v284, %v285
    %v287 = vsub.f32 1.0, %v286
    %v288 = vmul.f32 %v285, %v287
    %v289 = vadd.f32 %v285, %v288
    %vm290 = vweird.f32 %v284
    %vm291 = vweird.f32 %v285
    %vm292 = vmor %vm290, %vm291
    %v293 = vsel %vm292, %v285, %v289
    %v294 = vand.u32 2147483647, %v284
    %vm295 = vcmp.eq.f32.partialorder %v294, 8.507059e+37
    %v296 = vand.u32 %v284, 2147483648
    %v297 = vor.u32 1.1754944e-38, %v296
    %v298 = vsel %vm295, %v297, %v293
    %v299 = vmul.f32 1.0, %v298
    %s300 = scalar_lea.vmem [#allocation5], 80
    %v301 = vld [vmem:[%s300] sm:$0xff]
    %303 = vset.pattern.permute.xlu0 10
    %304 = vperm.xlu0 %303, %v301
    %v305 = vpop.permute.xlu0 %304
    %vm307 = vcmask 39936
    %v308 = vsel %vm307, %v301, 0
    %vm310 = vcmask 1044480
    %v312 = vsel %vm310, %v299, 0
    %314 = vmatpush.msra.mxu0 0.0
    %315 = vmatpush.msra.mxu0 0.0
    %316 = vmatpush.msra.mxu0 0.0
    %317 = vmatpush.msra.mxu0 0.0
    %318 = vmatpush.msra.mxu0 0.0
    %319 = vmatpush.msra.mxu0 0.0
    %320 = vmatpush.msra.mxu0 0.0
    %321 = vmatpush.msra.mxu0 0.0
    %322 = vmatpush.msra.mxu0 0.0
    %323 = vmatpush.msra.mxu0 0.0
    %324 = vmatpush.msra.mxu0 0.0
    %325 = vmatpush.msra.mxu0 0.0
    %326 = vmatpush.msra.mxu0 0.0
    %327 = vmatpush.msra.mxu0 0.0
    %328 = vmatpush.msra.mxu0 0.0
    %329 = vmatpush.msra.mxu0 %v312
    %330 = vmatmul.f32.gmra.mxu0 %v308
    %v331 = vpop.f32.mrf.mxu0
    %v332 = vadd.f32 %v305, %v331
    %333 = vdwg.mxu0
    %v334 = vxor.u32 %v332, 2147483648
    %v335 = vmul.f32 %v334, 1.442695
    %v336 = vpow.pop %v335
    %v337 = vadd.f32 %v336, 1.0
    %v338 = vrcp.pop %v337
    %v339 = vmul.f32 %v337, %v338
    %v340 = vsub.f32 1.0, %v339
    %v341 = vmul.f32 %v338, %v340
    %v342 = vadd.f32 %v338, %v341
    %vm343 = vweird.f32 %v337
    %vm344 = vweird.f32 %v338
    %vm345 = vmor %vm343, %vm344
    %v346 = vsel %vm345, %v338, %v342
    %v347 = vand.u32 2147483647, %v337
    %vm348 = vcmp.eq.f32.partialorder %v347, 8.507059e+37
    %v349 = vand.u32 %v337, 2147483648
    %v350 = vor.u32 1.1754944e-38, %v349
    %v351 = vsel %vm348, %v350, %v346
    %v352 = vmul.f32 1.0, %v351
    %s353 = scalar_lea.vmem [#allocation5], 96
    %v354 = vld [vmem:[%s353] sm:$0xff]
    %356 = vset.pattern.permute.xlu0 10
    %357 = vperm.xlu0 %356, %v354
    %v358 = vpop.permute.xlu0 %357
    %vm360 = vcmask 31744
    %v361 = vsel %vm360, %v354, 0
    %vm363 = vcmask 1043456
    %v365 = vsel %vm363, %v352, 0
    %367 = vmatpush.msra.mxu0 0.0
    %368 = vmatpush.msra.mxu0 0.0
    %369 = vmatpush.msra.mxu0 0.0
    %370 = vmatpush.msra.mxu0 0.0
    %371 = vmatpush.msra.mxu0 0.0
    %372 = vmatpush.msra.mxu0 0.0
    %373 = vmatpush.msra.mxu0 0.0
    %374 = vmatpush.msra.mxu0 0.0
    %375 = vmatpush.msra.mxu0 0.0
    %376 = vmatpush.msra.mxu0 0.0
    %377 = vmatpush.msra.mxu0 0.0
    %378 = vmatpush.msra.mxu0 0.0
    %379 = vmatpush.msra.mxu0 0.0
    %380 = vmatpush.msra.mxu0 0.0
    %381 = vmatpush.msra.mxu0 0.0
    %382 = vmatpush.msra.mxu0 %v365
    %383 = vmatmul.f32.gmra.mxu0 %v361
    %v384 = vpop.f32.mrf.mxu0
    %v385 = vadd.f32 %v358, %v384
    %386 = vdwg.mxu0
    %v387 = vxor.u32 %v385, 2147483648
    %v388 = vmul.f32 %v387, 1.442695
    %v389 = vpow.pop %v388
    %v390 = vadd.f32 %v389, 1.0
    %v391 = vrcp.pop %v390
    %v392 = vmul.f32 %v390, %v391
    %v393 = vsub.f32 1.0, %v392
    %v394 = vmul.f32 %v391, %v393
    %v395 = vadd.f32 %v391, %v394
    %vm396 = vweird.f32 %v390
    %vm397 = vweird.f32 %v391
    %vm398 = vmor %vm396, %vm397
    %v399 = vsel %vm398, %v391, %v395
    %v400 = vand.u32 2147483647, %v390
    %vm401 = vcmp.eq.f32.partialorder %v400, 8.507059e+37
    %v402 = vand.u32 %v390, 2147483648
    %v403 = vor.u32 1.1754944e-38, %v402
    %v404 = vsel %vm401, %v403, %v399
    %v405 = vmul.f32 1.0, %v404
    %s406 = scalar_lea.vmem [#allocation5], 112
    %v407 = vld [vmem:[%s406] sm:$0xff]
    %409 = vset.pattern.permute.xlu0 10
    %410 = vperm.xlu0 %409, %v407
    %v411 = vpop.permute.xlu0 %410
    %vm413 = vcmask 23552
    %v414 = vsel %vm413, %v407, 0
    %vm416 = vcmask 1042432
    %v418 = vsel %vm416, %v405, 0
    %420 = vmatpush.msra.mxu0 0.0
    %421 = vmatpush.msra.mxu0 0.0
    %422 = vmatpush.msra.mxu0 0.0
    %423 = vmatpush.msra.mxu0 0.0
    %424 = vmatpush.msra.mxu0 0.0
    %425 = vmatpush.msra.mxu0 0.0
    %426 = vmatpush.msra.mxu0 0.0
    %427 = vmatpush.msra.mxu0 0.0
    %428 = vmatpush.msra.mxu0 0.0
    %429 = vmatpush.msra.mxu0 0.0
    %430 = vmatpush.msra.mxu0 0.0
    %431 = vmatpush.msra.mxu0 0.0
    %432 = vmatpush.msra.mxu0 0.0
    %433 = vmatpush.msra.mxu0 0.0
    %434 = vmatpush.msra.mxu0 0.0
    %435 = vmatpush.msra.mxu0 %v418
    %436 = vmatmul.f32.gmra.mxu0 %v414
    %v437 = vpop.f32.mrf.mxu0
    %v438 = vadd.f32 %v411, %v437
    %439 = vdwg.mxu0
    %v440 = vxor.u32 %v438, 2147483648
    %v441 = vmul.f32 %v440, 1.442695
    %v442 = vpow.pop %v441
    %v443 = vadd.f32 %v442, 1.0
    %v444 = vrcp.pop %v443
    %v445 = vmul.f32 %v443, %v444
    %v446 = vsub.f32 1.0, %v445
    %v447 = vmul.f32 %v444, %v446
    %v448 = vadd.f32 %v444, %v447
    %vm449 = vweird.f32 %v443
    %vm450 = vweird.f32 %v444
    %vm451 = vmor %vm449, %vm450
    %v452 = vsel %vm451, %v444, %v448
    %v453 = vand.u32 2147483647, %v443
    %vm454 = vcmp.eq.f32.partialorder %v453, 8.507059e+37
    %v455 = vand.u32 %v443, 2147483648
    %v456 = vor.u32 1.1754944e-38, %v455
    %v457 = vsel %vm454, %v456, %v452
    %v458 = vmul.f32 1.0, %v457
    %s459 = scalar_lea.vmem [#allocation5], 128
    %v460 = vld [vmem:[%s459] sm:$0xff]
    %462 = vset.pattern.permute.xlu0 10
    %463 = vperm.xlu0 %462, %v460
    %v464 = vpop.permute.xlu0 %463
    %vm466 = vcmask 15360
    %v467 = vsel %vm466, %v460, 0
    %v470 = vsel %vm63, %v458, 0
    %472 = vmatpush.msra.mxu0 0.0
    %473 = vmatpush.msra.mxu0 0.0
    %474 = vmatpush.msra.mxu0 0.0
    %475 = vmatpush.msra.mxu0 0.0
    %476 = vmatpush.msra.mxu0 0.0
    %477 = vmatpush.msra.mxu0 0.0
    %478 = vmatpush.msra.mxu0 0.0
    %479 = vmatpush.msra.mxu0 0.0
    %480 = vmatpush.msra.mxu0 0.0
    %481 = vmatpush.msra.mxu0 0.0
    %482 = vmatpush.msra.mxu0 0.0
    %483 = vmatpush.msra.mxu0 0.0
    %484 = vmatpush.msra.mxu0 0.0
    %485 = vmatpush.msra.mxu0 0.0
    %486 = vmatpush.msra.mxu0 0.0
    %487 = vmatpush.msra.mxu0 %v470
    %488 = vmatmul.f32.gmra.mxu0 %v467
    %v489 = vpop.f32.mrf.mxu0
    %v490 = vadd.f32 %v464, %v489
    %491 = vdwg.mxu0
    %v492 = vxor.u32 %v490, 2147483648
    %v493 = vmul.f32 %v492, 1.442695
    %v494 = vpow.pop %v493
    %v495 = vadd.f32 %v494, 1.0
    %v496 = vrcp.pop %v495
    %v497 = vmul.f32 %v495, %v496
    %v498 = vsub.f32 1.0, %v497
    %v499 = vmul.f32 %v496, %v498
    %v500 = vadd.f32 %v496, %v499
    %vm501 = vweird.f32 %v495
    %vm502 = vweird.f32 %v496
    %vm503 = vmor %vm501, %vm502
    %v504 = vsel %vm503, %v496, %v500
    %v505 = vand.u32 2147483647, %v495
    %vm506 = vcmp.eq.f32.partialorder %v505, 8.507059e+37
    %v507 = vand.u32 %v495, 2147483648
    %v508 = vor.u32 1.1754944e-38, %v507
    %v509 = vsel %vm506, %v508, %v504
    %v510 = vmul.f32 1.0, %v509
    %511 = vst [vmem:[#allocation7] sm:$0x1] %v510
    // Predicated region
    $region18: #{tpu_custom_call.1} parent=1 // pred_check
      _
    $region19: #{tpu_custom_call.1} parent=1 // pred_check_branch
      %513 = sbr.rel (0) target = $region21
    $region20: #{tpu_custom_call.1} parent=1 // pred_region
      %515 = vsyncadd [#allocation4], 0
      %s517 = sshll.u32 [#allocation7], 4
      %s518 = int_to_ptr.vmem [resolvable:$true] %s517
      %s519 = sshll.u32 %s2, 4
      %s520 = int_to_ptr.hbm [resolvable:$true] %s519
      %522 = dma.vmem_to_hbm [thread:$0]  %s518, 16, %s520, [#allocation4]
    $region21: #{tpu_custom_call.1} parent=1 // pred_fallthru
      _
    // Predicated region
    $region22: #{tpu_custom_call.1} parent=1 // pred_check
      _
    $region23: #{tpu_custom_call.1} parent=1 // pred_check_branch
      %524 = sbr.rel (0) target = $region25
    $region24: #{tpu_custom_call.1} parent=1 // pred_region
      %526 = dma.done [#allocation4], 16
    $region25: #{tpu_custom_call.1} parent=1 // pred_fallthru
      _
    %527 = vsyncpa [#allocation3], 1
    %528 = vsyncpa [#allocation6], 1
    %529 = vsyncpa [#allocation4], 1

</llo_original>
